<compile_context>
chip_gen: v7x
topology: tpu7x:2x2x1
jax: 0.10.0
libtpu: 0.0.40
codegen_flags: <defaults>
</compile_context>

<pallas_src>
import math

import jax
import jax.numpy as jnp
from jax.experimental import pallas as pl
from jax.experimental.pallas import tpu as pltpu

_CAUSAL_NEG = -1.0e9   # masked_fill_ value used by the PyTorch module
_BOTH_NEG = -2.0e9     # causal mask (-1e9) + RPE mask (-1e9), as in the module


def _flash_rpe_kernel(rel_ref, q_ref, k_ref, v_ref, o_ref, m_sc, l_sc, acc_sc):
    """One (batch, q_tile, kv_tile) grid step over all heads.

    rel_ref : (max_position,) f32 in SMEM (relative-position embedding table)
    q_ref   : (H, Tq, D) bf16      k_ref/v_ref : (H, Tk, D) bf16
    o_ref   : (Tq, H*D) f32
    scratch : m/l (H, Tq, 1) f32, acc (H, Tq, D) f32
    """
    H, Tq, D = q_ref.shape
    Tk = k_ref.shape[1]
    max_position = rel_ref.shape[0]

    qi = pl.program_id(1)
    kv = pl.program_id(2)

    @pl.when(kv == 0)
    def _init():
        m_sc[...] = jnp.full(m_sc.shape, -jnp.inf, jnp.float32)
        l_sc[...] = jnp.zeros(l_sc.shape, jnp.float32)
        acc_sc[...] = jnp.zeros(acc_sc.shape, jnp.float32)

    # Skip kv tiles entirely above the causal diagonal: every entry is biased
    # to <= -2e9 and contributes exactly 0 after exp() in f32.
    @pl.when(kv * Tk <= qi * Tq + (Tq - 1))
    def _compute():
        # Scores for all heads at once: (H, Tq, Tk).  bf16 MXU, f32 accumulate.
        # The 1/sqrt(D) scale is already folded into the Q projection weights.
        s = jnp.einsum("hqd,hkd->hqk", q_ref[...], k_ref[...],
                       preferred_element_type=jnp.float32)

        # Combined causal + relative-position bias, identical to the PyTorch
        # module (causal masked_fill_(-1e9) followed by adding the RPE matrix
        # whose masked entries are -1e9):
        #   dist > 0                      -> -2e9
        #   dist == 0 or dist <= -max_pos -> -1e9
        #   -max_pos < dist < 0           -> rel_emb[-dist - 1]
        row = jax.lax.broadcasted_iota(jnp.int32, (Tq, Tk), 0) + qi * Tq
        col = jax.lax.broadcasted_iota(jnp.int32, (Tq, Tk), 1) + kv * Tk
        dist = col - row
        bias = jnp.where(dist > 0, jnp.float32(_BOTH_NEG), jnp.float32(_CAUSAL_NEG))
        # Tiny select-chain over the SMEM-resident embedding table (unrolled;
        # max_position is a small compile-time constant).
        for p in range(1, max_position):
            bias = jnp.where(dist == -p, rel_ref[p - 1], bias)
        s = s + bias[None, :, :]

        # Online-softmax update (f32 statistics).
        m_prev = m_sc[...]
        m_new = jnp.maximum(m_prev, jnp.max(s, axis=-1, keepdims=True))
        alpha = jnp.exp(m_prev - m_new)
        p_ = jnp.exp(s - m_new)
        l_sc[...] = alpha * l_sc[...] + jnp.sum(p_, axis=-1, keepdims=True)
        acc_sc[...] = alpha * acc_sc[...] + jnp.einsum(
            "hqk,hkd->hqd", p_.astype(jnp.bfloat16), v_ref[...],
            preferred_element_type=jnp.float32)
        m_sc[...] = m_new

    @pl.when(kv == pl.num_programs(2) - 1)
    def _finalize():
        inv_l = pl.reciprocal(l_sc[...], approx=True)          # (H, Tq, 1)
        # Heads written side by side -> lane-dense (Tq, H*D) block, so the
        # (B, S, H*D) output needs no post-kernel transpose/reshape.
        for h in range(H):
            o_ref[:, h * D:(h + 1) * D] = (acc_sc[h] * inv_l[h]).astype(o_ref.dtype)


def _pick_tile(s: int, target: int = 128) -> int:
    """Largest multiple-of-8 divisor of s that is <= target (or s itself)."""
    if s <= target:
        return s
    for t in range(target, 0, -8):
        if s % t == 0:
            return t
    return s


def disentangled_mhsa(q, k, v, wq, wk, wv, rel_emb, num_heads, d_model, max_position):
    """q, k, v: (B, S, d_model) f32.  wq/wk/wv: PyTorch Linear weights (H*D, D).

    Returns (B, S, H*D) f32, matching Disentangled_MHSA.forward (dropout=0)."""
    B, S, D = q.shape
    H = num_heads
    assert D == d_model
    HD = H * D

    # --- Projections: wide GEMMs in XLA (fills the MXU, weights read once). ---
    # PyTorch Linear: y = x @ W.T.  Fold the 1/sqrt(D) score scale into W_q.
    scale = 1.0 / math.sqrt(D)

    def project(x, w, s_):
        y = jnp.dot(x.reshape(B * S, D), (w * s_).T,
                    preferred_element_type=jnp.float32)
        y = y.reshape(B, S, H, D).transpose(0, 2, 1, 3)        # (B, H, S, D)
        return y.astype(jnp.bfloat16)                          # bf16 MXU inputs

    Qp = project(q, wq, scale)
    Kp = project(k, wk, 1.0)
    Vp = project(v, wv, 1.0)

    tile_q = _pick_tile(S)
    tile_k = _pick_tile(S)
    n_q, n_k = S // tile_q, S // tile_k

    rel_flat = rel_emb.reshape(-1).astype(jnp.float32)         # (max_position,)

    grid_spec = pltpu.PrefetchScalarGridSpec(
        num_scalar_prefetch=0,
        grid=(B, n_q, n_k),
        in_specs=[
            # Tiny RPE table lives in SMEM; the (S,S) bias is never materialized.
            pl.BlockSpec(memory_space=pltpu.MemorySpace.SMEM),
            pl.BlockSpec((None, H, tile_q, D), lambda b, qi, kv: (b, 0, qi, 0)),
            pl.BlockSpec((None, H, tile_k, D), lambda b, qi, kv: (b, 0, kv, 0)),
            pl.BlockSpec((None, H, tile_k, D), lambda b, qi, kv: (b, 0, kv, 0)),
        ],
        out_specs=pl.BlockSpec((None, tile_q, HD), lambda b, qi, kv: (b, qi, 0)),
        scratch_shapes=[
            pltpu.VMEM((H, tile_q, 1), jnp.float32),   # running max  m
            pltpu.VMEM((H, tile_q, 1), jnp.float32),   # running sum  l
            pltpu.VMEM((H, tile_q, D), jnp.float32),   # output accumulator
        ],
    )

    return pl.pallas_call(
        _flash_rpe_kernel,
        out_shape=jax.ShapeDtypeStruct((B, S, HD), jnp.float32),
        grid_spec=grid_spec,
        compiler_params=pltpu.CompilerParams(
            # batch & q-tile axes shard across TensorCores; kv is the reduction.
            dimension_semantics=("parallel", "parallel", "arbitrary")),
    )(rel_flat, Qp, Kp, Vp)


# ----------------------------- pure-JAX reference -----------------------------

def _rpe_bias_ref(seq, max_position, rel_emb):
    i = jnp.arange(seq)[:, None]
    j = jnp.arange(seq)[None, :]
    dist = (j - i).astype(jnp.float32)
    idx = (-jnp.clip(dist, -float(max_position), -1.0)).astype(jnp.int32) - 1
    vals = rel_emb.reshape(-1)[idx]
    mask = (jnp.abs(dist) >= max_position) | (dist >= 0)
    return jnp.where(mask, _CAUSAL_NEG, vals).astype(jnp.float32)


def _reference(q, k, v, wq, wk, wv, rel_emb, H, D, max_position):
    """Mirrors the PyTorch forward in f32 (for a correctness check)."""
    B, S, _ = q.shape
    Q = (q @ wq.T).reshape(B, S, H, D).transpose(0, 2, 1, 3)
    K = (k @ wk.T).reshape(B, S, H, D).transpose(0, 2, 1, 3)
    V = (v @ wv.T).reshape(B, S, H, D).transpose(0, 2, 1, 3)
    scores = Q @ jnp.swapaxes(K, -2, -1) / math.sqrt(D)
    i = jnp.arange(S)[:, None]
    j = jnp.arange(S)[None, :]
    scores = jnp.where(j <= i, scores, _CAUSAL_NEG)
    scores = scores + _rpe_bias_ref(S, max_position, rel_emb)[None, None]
    p = jax.nn.softmax(scores, axis=-1)
    out = p @ V
    return out.transpose(0, 2, 1, 3).reshape(B, S, H * D)


if __name__ == "__main__":
    def run_case(case_idx, B, S, d_model, num_heads, max_position):
        key = jax.random.fold_in(jax.random.PRNGKey(0), case_idx)
        k_q, k_k, k_v, k_wq, k_wk, k_wv, k_emb = jax.random.split(key, 7)
        q = jax.random.normal(k_q, (B, S, d_model), jnp.float32)
        k = jax.random.normal(k_k, (B, S, d_model), jnp.float32)
        v = jax.random.normal(k_v, (B, S, d_model), jnp.float32)
        bound = 1.0 / math.sqrt(d_model)
        wq = jax.random.uniform(k_wq, (num_heads * d_model, d_model), jnp.float32, -bound, bound)
        wk = jax.random.uniform(k_wk, (num_heads * d_model, d_model), jnp.float32, -bound, bound)
        wv = jax.random.uniform(k_wv, (num_heads * d_model, d_model), jnp.float32, -bound, bound)
        rel_emb = jax.random.normal(k_emb, (max_position, 1), jnp.float32)

        out = disentangled_mhsa(q, k, v, wq, wk, wv, rel_emb,
                                num_heads, d_model, max_position)
        out = jax.block_until_ready(out)

        ref = _reference(q, k, v, wq, wk, wv, rel_emb, num_heads, d_model, max_position)
        assert out.shape == (B, S, num_heads * d_model)
        max_err = float(jnp.max(jnp.abs(out - ref)))
        # bf16 MXU inputs + approx reciprocal -> loosen tolerance vs f32 ref.
        assert jnp.allclose(out, ref, atol=2e-2, rtol=2e-2), max_err

    # Small, module-consistent shapes (single-tile path).
    run_case(0, B=2, S=8, d_model=16, num_heads=2, max_position=4)
    # Slightly larger case exercising the multi-tile flash path
    # (q/kv tiling, online softmax, causal tile skip, in-kernel RPE).
    run_case(1, B=2, S=256, d_model=64, num_heads=2, max_position=16)

    print("KERNEL_OK")
</pallas_src>

<mosaic_0001>
module attributes {stable_mosaic.version = 11 : i64} {
  func.func @_flash_rpe_kernel(%arg0: i32, %arg1: i32, %arg2: i32, %arg3: memref<4xf32, #tpu.memory_space<smem>>, %arg4: memref<1x2x8x16xbf16, #tpu.memory_space<vmem>>, %arg5: memref<1x2x8x16xbf16, #tpu.memory_space<vmem>>, %arg6: memref<1x2x8x16xbf16, #tpu.memory_space<vmem>>, %arg7: memref<1x8x32xf32, #tpu.memory_space<vmem>>, %arg8: memref<2x8x1xf32, #tpu.memory_space<vmem>>, %arg9: memref<2x8x1xf32, #tpu.memory_space<vmem>>, %arg10: memref<2x8x16xf32, #tpu.memory_space<vmem>>) attributes {dimension_semantics = [#tpu.dimension_semantics<parallel>, #tpu.dimension_semantics<parallel>, #tpu.dimension_semantics<arbitrary>], iteration_bounds = array<i64: 2, 1, 1>, scalar_prefetch = 0 : i64, scratch_operands = 3 : i64, tpu.core_type = #tpu.core_type<tc>, window_params = [{transform_indices = @transform_0, window_bounds = array<i64: 4>}, {transform_indices = @transform_1, window_bounds = array<i64: 1, 2, 8, 16>}, {transform_indices = @transform_2, window_bounds = array<i64: 1, 2, 8, 16>}, {transform_indices = @transform_3, window_bounds = array<i64: 1, 2, 8, 16>}, {transform_indices = @transform_4, window_bounds = array<i64: 1, 8, 32>}]} {
    %c0_i32 = arith.constant 0 : i32
    %0 = arith.cmpi eq, %arg2, %c0_i32 : i32
    %1 = arith.extui %0 : i1 to i32
    %c0_i32_0 = arith.constant 0 : i32
    %2 = arith.cmpi ne, %1, %c0_i32_0 : i32
    scf.if %2 {
      %cst = arith.constant 0xFF800000 : f32
      %12 = vector.broadcast %cst : f32 to vector<2x8x1xf32>
      %c0 = arith.constant 0 : index
      %c0_5 = arith.constant 0 : index
      %c0_6 = arith.constant 0 : index
      %13 = vector.load %arg8[%c0, %c0_5, %c0_6] : memref<2x8x1xf32, #tpu.memory_space<vmem>>, vector<2x8x1xf32>
      tpu.vector_store %arg8[%c0, %c0_5, %c0_6], %12 {strides = array<i32>} : memref<2x8x1xf32, #tpu.memory_space<vmem>>, vector<2x8x1xf32>,
      %cst_7 = arith.constant 0.000000e+00 : f32
      %14 = vector.broadcast %cst_7 : f32 to vector<2x8x1xf32>
      %c0_8 = arith.constant 0 : index
      %c0_9 = arith.constant 0 : index
      %c0_10 = arith.constant 0 : index
      %15 = vector.load %arg9[%c0_8, %c0_9, %c0_10] : memref<2x8x1xf32, #tpu.memory_space<vmem>>, vector<2x8x1xf32>
      tpu.vector_store %arg9[%c0_8, %c0_9, %c0_10], %14 {strides = array<i32>} : memref<2x8x1xf32, #tpu.memory_space<vmem>>, vector<2x8x1xf32>,
      %cst_11 = arith.constant 0.000000e+00 : f32
      %16 = vector.broadcast %cst_11 : f32 to vector<2x8x16xf32>
      %c0_12 = arith.constant 0 : index
      %c0_13 = arith.constant 0 : index
      %c0_14 = arith.constant 0 : index
      %17 = vector.load %arg10[%c0_12, %c0_13, %c0_14] : memref<2x8x16xf32, #tpu.memory_space<vmem>>, vector<2x8x16xf32>
      tpu.vector_store %arg10[%c0_12, %c0_13, %c0_14], %16 {strides = array<i32>} : memref<2x8x16xf32, #tpu.memory_space<vmem>>, vector<2x8x16xf32>,
    } else {
    }
    %c8_i32 = arith.constant 8 : i32
    %3 = arith.muli %arg2, %c8_i32 : i32
    %c8_i32_1 = arith.constant 8 : i32
    %4 = arith.muli %arg1, %c8_i32_1 : i32
    %c7_i32 = arith.constant 7 : i32
    %5 = arith.addi %4, %c7_i32 : i32
    %6 = arith.cmpi sle, %3, %5 : i32
    %7 = arith.extui %6 : i1 to i32
    %c0_i32_2 = arith.constant 0 : i32
    %8 = arith.cmpi ne, %7, %c0_i32_2 : i32
    scf.if %8 {
      %c0 = arith.constant 0 : index
      %c0_5 = arith.constant 0 : index
      %c0_6 = arith.constant 0 : index
      %c0_7 = arith.constant 0 : index
      %12 = vector.load %arg4[%c0, %c0_5, %c0_6, %c0_7] : memref<1x2x8x16xbf16, #tpu.memory_space<vmem>>, vector<1x2x8x16xbf16>
      %13 = vector.shape_cast %12 : vector<1x2x8x16xbf16> to vector<2x8x16xbf16>
      %c0_8 = arith.constant 0 : index
      %c0_9 = arith.constant 0 : index
      %c0_10 = arith.constant 0 : index
      %c0_11 = arith.constant 0 : index
      %14 = vector.load %arg5[%c0_8, %c0_9, %c0_10, %c0_11] : memref<1x2x8x16xbf16, #tpu.memory_space<vmem>>, vector<1x2x8x16xbf16>
      %15 = vector.shape_cast %14 : vector<1x2x8x16xbf16> to vector<2x8x16xbf16>
      "tpu.trace_start"() <{level = 10 : i32, message = "hqd,hkd->hqk"}> : () -> ()
      %cst = arith.constant dense<0.000000e+00> : vector<2x8x8xf32>
      %16 = tpu.matmul %13, %15, %cst {dimension_numbers = #tpu.dot_dimension_numbers<[2], [2], [1], [1], [0, 0, 0, 1, 1, 1], [0], [0]>} : vector<2x8x16xbf16>, vector<2x8x16xbf16>, vector<2x8x8xf32> -> vector<2x8x8xf32>
      "tpu.trace_stop"() : () -> ()
      %17 = tpu.iota {dimensions = array<i32: 0>} : vector<8x8xi32>
      %c8_i32_12 = arith.constant 8 : i32
      %18 = arith.muli %arg1, %c8_i32_12 : i32
      %19 = vector.broadcast %18 : i32 to vector<8x8xi32>
      %20 = arith.addi %17, %19 : vector<8x8xi32>
      %21 = tpu.iota {dimensions = array<i32: 1>} : vector<8x8xi32>
      %c8_i32_13 = arith.constant 8 : i32
      %22 = arith.muli %arg2, %c8_i32_13 : i32
      %23 = vector.broadcast %22 : i32 to vector<8x8xi32>
      %24 = arith.addi %21, %23 : vector<8x8xi32>
      %25 = arith.subi %24, %20 : vector<8x8xi32>
      %c0_i32_14 = arith.constant 0 : i32
      %26 = vector.broadcast %c0_i32_14 : i32 to vector<8x8xi32>
      %27 = arith.cmpi sgt, %25, %26 : vector<8x8xi32>
      %cst_15 = arith.constant -2.000000e+09 : f32
      %cst_16 = arith.constant -1.000000e+09 : f32
      %28 = vector.broadcast %cst_15 : f32 to vector<8x8xf32>
      %29 = vector.broadcast %cst_16 : f32 to vector<8x8xf32>
      %30 = arith.select %27, %28, %29 : vector<8x8xi1>, vector<8x8xf32>
      %c-1_i32 = arith.constant -1 : i32
      %31 = vector.broadcast %c-1_i32 : i32 to vector<8x8xi32>
      %32 = arith.cmpi eq, %25, %31 : vector<8x8xi32>
      %c0_17 = arith.constant 0 : index
      %33 = memref.load %arg3[%c0_17] : memref<4xf32, #tpu.memory_space<smem>>
      %34 = vector.broadcast %33 : f32 to vector<8x8xf32>
      %35 = arith.select %32, %34, %30 : vector<8x8xi1>, vector<8x8xf32>
      %c-2_i32 = arith.constant -2 : i32
      %36 = vector.broadcast %c-2_i32 : i32 to vector<8x8xi32>
      %37 = arith.cmpi eq, %25, %36 : vector<8x8xi32>
      %c1 = arith.constant 1 : index
      %38 = memref.load %arg3[%c1] : memref<4xf32, #tpu.memory_space<smem>>
      %39 = vector.broadcast %38 : f32 to vector<8x8xf32>
      %40 = arith.select %37, %39, %35 : vector<8x8xi1>, vector<8x8xf32>
      %c-3_i32 = arith.constant -3 : i32
      %41 = vector.broadcast %c-3_i32 : i32 to vector<8x8xi32>
      %42 = arith.cmpi eq, %25, %41 : vector<8x8xi32>
      %c2 = arith.constant 2 : index
      %43 = memref.load %arg3[%c2] : memref<4xf32, #tpu.memory_space<smem>>
      %44 = vector.broadcast %43 : f32 to vector<8x8xf32>
      %45 = arith.select %42, %44, %40 : vector<8x8xi1>, vector<8x8xf32>
      %46 = vector.shape_cast %45 : vector<8x8xf32> to vector<1x8x8xf32>
      %47 = vector.broadcast %46 : vector<1x8x8xf32> to vector<2x8x8xf32>
      %48 = arith.addf %16, %47 : vector<2x8x8xf32>
      %c0_18 = arith.constant 0 : index
      %c0_19 = arith.constant 0 : index
      %c0_20 = arith.constant 0 : index
      %49 = vector.load %arg8[%c0_18, %c0_19, %c0_20] : memref<2x8x1xf32, #tpu.memory_space<vmem>>, vector<2x8x1xf32>
      %cst_21 = arith.constant dense<0xFF800000> : vector<2x8xf32>
      %50 = vector.multi_reduction <maximumf>, %48, %cst_21 [2] : vector<2x8x8xf32> to vector<2x8xf32>
      %51 = vector.shape_cast %50 : vector<2x8xf32> to vector<2x8x1xf32>
      %52 = arith.maximumf %49, %51 : vector<2x8x1xf32>
      %53 = arith.subf %49, %52 : vector<2x8x1xf32>
      %54 = math.exp %53 : vector<2x8x1xf32>
      %55 = vector.broadcast %52 : vector<2x8x1xf32> to vector<2x8x8xf32>
      %56 = arith.subf %48, %55 : vector<2x8x8xf32>
      %57 = math.exp %56 : vector<2x8x8xf32>
      %c0_22 = arith.constant 0 : index
      %c0_23 = arith.constant 0 : index
      %c0_24 = arith.constant 0 : index
      %58 = vector.load %arg9[%c0_22, %c0_23, %c0_24] : memref<2x8x1xf32, #tpu.memory_space<vmem>>, vector<2x8x1xf32>
      %59 = arith.mulf %54, %58 : vector<2x8x1xf32>
      %cst_25 = arith.constant dense<0.000000e+00> : vector<2x8xf32>
      %60 = vector.multi_reduction <add>, %57, %cst_25 [2] : vector<2x8x8xf32> to vector<2x8xf32>
      %61 = vector.shape_cast %60 : vector<2x8xf32> to vector<2x8x1xf32>
      %62 = arith.addf %59, %61 : vector<2x8x1xf32>
      %c0_26 = arith.constant 0 : index
      %c0_27 = arith.constant 0 : index
      %c0_28 = arith.constant 0 : index
      %63 = vector.load %arg9[%c0_26, %c0_27, %c0_28] : memref<2x8x1xf32, #tpu.memory_space<vmem>>, vector<2x8x1xf32>
      tpu.vector_store %arg9[%c0_26, %c0_27, %c0_28], %62 {strides = array<i32>} : memref<2x8x1xf32, #tpu.memory_space<vmem>>, vector<2x8x1xf32>,
      %c0_29 = arith.constant 0 : index
      %c0_30 = arith.constant 0 : index
      %c0_31 = arith.constant 0 : index
      %64 = vector.load %arg10[%c0_29, %c0_30, %c0_31] : memref<2x8x16xf32, #tpu.memory_space<vmem>>, vector<2x8x16xf32>
      %65 = vector.broadcast %54 : vector<2x8x1xf32> to vector<2x8x16xf32>
      %66 = arith.mulf %65, %64 : vector<2x8x16xf32>
      %67 = arith.truncf %57 : vector<2x8x8xf32> to vector<2x8x8xbf16>
      %c0_32 = arith.constant 0 : index
      %c0_33 = arith.constant 0 : index
      %c0_34 = arith.constant 0 : index
      %c0_35 = arith.constant 0 : index
      %68 = vector.load %arg6[%c0_32, %c0_33, %c0_34, %c0_35] : memref<1x2x8x16xbf16, #tpu.memory_space<vmem>>, vector<1x2x8x16xbf16>
      %69 = vector.shape_cast %68 : vector<1x2x8x16xbf16> to vector<2x8x16xbf16>
      "tpu.trace_start"() <{level = 10 : i32, message = "hqk,hkd->hqd"}> : () -> ()
      %cst_36 = arith.constant dense<0.000000e+00> : vector<2x8x16xf32>
      %70 = tpu.matmul %67, %69, %cst_36 {dimension_numbers = #tpu.dot_dimension_numbers<[2], [1], [1], [2], [0, 0, 0, 1, 1, 2], [0], [0]>} : vector<2x8x8xbf16>, vector<2x8x16xbf16>, vector<2x8x16xf32> -> vector<2x8x16xf32>
      "tpu.trace_stop"() : () -> ()
      %71 = arith.addf %66, %70 : vector<2x8x16xf32>
      %c0_37 = arith.constant 0 : index
      %c0_38 = arith.constant 0 : index
      %c0_39 = arith.constant 0 : index
      %72 = vector.load %arg10[%c0_37, %c0_38, %c0_39] : memref<2x8x16xf32, #tpu.memory_space<vmem>>, vector<2x8x16xf32>
      tpu.vector_store %arg10[%c0_37, %c0_38, %c0_39], %71 {strides = array<i32>} : memref<2x8x16xf32, #tpu.memory_space<vmem>>, vector<2x8x16xf32>,
      %c0_40 = arith.constant 0 : index
      %c0_41 = arith.constant 0 : index
      %c0_42 = arith.constant 0 : index
      %73 = vector.load %arg8[%c0_40, %c0_41, %c0_42] : memref<2x8x1xf32, #tpu.memory_space<vmem>>, vector<2x8x1xf32>
      tpu.vector_store %arg8[%c0_40, %c0_41, %c0_42], %52 {strides = array<i32>} : memref<2x8x1xf32, #tpu.memory_space<vmem>>, vector<2x8x1xf32>,
    } else {
    }
    %c0_i32_3 = arith.constant 0 : i32
    %9 = arith.cmpi eq, %arg2, %c0_i32_3 : i32
    %10 = arith.extui %9 : i1 to i32
    %c0_i32_4 = arith.constant 0 : i32
    %11 = arith.cmpi ne, %10, %c0_i32_4 : i32
    scf.if %11 {
      %c0 = arith.constant 0 : index
      %c0_5 = arith.constant 0 : index
      %c0_6 = arith.constant 0 : index
      %12 = vector.load %arg9[%c0, %c0_5, %c0_6] : memref<2x8x1xf32, #tpu.memory_space<vmem>>, vector<2x8x1xf32>
      %13 = tpu.reciprocal %12 {approx = true} : vector<2x8x1xf32> -> vector<2x8x1xf32>
      %c0_7 = arith.constant 0 : index
      %c0_8 = arith.constant 0 : index
      %c0_9 = arith.constant 0 : index
      %14 = vector.load %arg10[%c0_7, %c0_8, %c0_9] : memref<2x8x16xf32, #tpu.memory_space<vmem>>, vector<1x8x16xf32>
      %15 = vector.shape_cast %14 : vector<1x8x16xf32> to vector<8x16xf32>
      %16 = vector.extract_strided_slice %13 {offsets = [0, 0, 0], sizes = [1, 8, 1], strides = [1, 1, 1]} : vector<2x8x1xf32> to vector<1x8x1xf32>
      %17 = vector.shape_cast %16 : vector<1x8x1xf32> to vector<8x1xf32>
      %18 = vector.broadcast %17 : vector<8x1xf32> to vector<8x16xf32>
      %19 = arith.mulf %15, %18 : vector<8x16xf32>
      %c0_10 = arith.constant 0 : index
      %c0_11 = arith.constant 0 : index
      %c0_12 = arith.constant 0 : index
      %20 = vector.load %arg7[%c0_10, %c0_11, %c0_12] : memref<1x8x32xf32, #tpu.memory_space<vmem>>, vector<1x8x16xf32>
      %21 = vector.shape_cast %20 : vector<1x8x16xf32> to vector<8x16xf32>
      %22 = vector.shape_cast %19 : vector<8x16xf32> to vector<1x8x16xf32>
      tpu.vector_store %arg7[%c0_10, %c0_11, %c0_12], %22 {strides = array<i32>} : memref<1x8x32xf32, #tpu.memory_space<vmem>>, vector<1x8x16xf32>,
      %c1 = arith.constant 1 : index
      %c0_13 = arith.constant 0 : index
      %c0_14 = arith.constant 0 : index
      %23 = vector.load %arg10[%c1, %c0_13, %c0_14] : memref<2x8x16xf32, #tpu.memory_space<vmem>>, vector<1x8x16xf32>
      %24 = vector.shape_cast %23 : vector<1x8x16xf32> to vector<8x16xf32>
      %25 = vector.extract_strided_slice %13 {offsets = [1, 0, 0], sizes = [1, 8, 1], strides = [1, 1, 1]} : vector<2x8x1xf32> to vector<1x8x1xf32>
      %26 = vector.shape_cast %25 : vector<1x8x1xf32> to vector<8x1xf32>
      %27 = vector.broadcast %26 : vector<8x1xf32> to vector<8x16xf32>
      %28 = arith.mulf %24, %27 : vector<8x16xf32>
      %c0_15 = arith.constant 0 : index
      %c0_16 = arith.constant 0 : index
      %c16 = arith.constant 16 : index
      %29 = vector.load %arg7[%c0_15, %c0_16, %c16] : memref<1x8x32xf32, #tpu.memory_space<vmem>>, vector<1x8x16xf32>
      %30 = vector.shape_cast %29 : vector<1x8x16xf32> to vector<8x16xf32>
      %31 = vector.shape_cast %28 : vector<8x16xf32> to vector<1x8x16xf32>
      tpu.vector_store %arg7[%c0_15, %c0_16, %c16], %31 {strides = array<i32>} : memref<1x8x32xf32, #tpu.memory_space<vmem>>, vector<1x8x16xf32>,
    } else {
    }
    return
  }
  func.func @transform_0(%arg0: i32, %arg1: i32, %arg2: i32) -> i32 {
    %c0_i32 = arith.constant 0 : i32
    %c0_i32_0 = arith.constant 0 : i32
    return %c0_i32 : i32
  }
  func.func @transform_1(%arg0: i32, %arg1: i32, %arg2: i32) -> (i32, i32, i32, i32) {
    %c0_i32 = arith.constant 0 : i32
    %c0_i32_0 = arith.constant 0 : i32
    %c0_i32_1 = arith.constant 0 : i32
    return %arg0, %c0_i32, %arg1, %c0_i32_0 : i32, i32, i32, i32
  }
  func.func @transform_2(%arg0: i32, %arg1: i32, %arg2: i32) -> (i32, i32, i32, i32) {
    %c0_i32 = arith.constant 0 : i32
    %c0_i32_0 = arith.constant 0 : i32
    %c0_i32_1 = arith.constant 0 : i32
    return %arg0, %c0_i32, %arg2, %c0_i32_0 : i32, i32, i32, i32
  }
  func.func @transform_3(%arg0: i32, %arg1: i32, %arg2: i32) -> (i32, i32, i32, i32) {
    %c0_i32 = arith.constant 0 : i32
    %c0_i32_0 = arith.constant 0 : i32
    %c0_i32_1 = arith.constant 0 : i32
    return %arg0, %c0_i32, %arg2, %c0_i32_0 : i32, i32, i32, i32
  }
  func.func @transform_4(%arg0: i32, %arg1: i32, %arg2: i32) -> (i32, i32, i32) {
    %c0_i32 = arith.constant 0 : i32
    %c0_i32_0 = arith.constant 0 : i32
    return %arg0, %arg1, %c0_i32 : i32, i32, i32
  }
}

</mosaic_0001>

<llo_original>
// kernel: tpu_custom_call.1
$region0: #{tpu_custom_call.1}
  #allocation0 [shape = 'u32[]', space=smem, size = 0x4, offset = 0x4, fixed_abs, tag = 'smem constant byte address 0x4 - core index']
  #allocation1 [shape = 'u32[144,128]{1,0:T(1,128)}', space=vmem, size = 0x12000, scoped, tag = 'internal scratch']
  #allocation2 [shape = 'f32[2,8,1]{2,1,0:T(8,128)}', space=vmem, size = 0x2000, scoped, tag = 'scratch operand']
  #allocation3 [shape = 'f32[2,8,1]{2,1,0:T(8,128)}', space=vmem, size = 0x2000, scoped, tag = 'scratch operand']
  #allocation4 [shape = 'f32[2,8,16]{2,1,0:T(8,128)}', space=vmem, size = 0x2000, scoped, tag = 'scratch operand']
  %s0 = inlined_call_operand.hbm [shape: f32[4], index: 0, kind: input, shape index: {}]
  %s1 = inlined_call_operand.hbm [shape: bf16[2,2,8,16], index: 1, kind: input, shape index: {}]
  %s2 = inlined_call_operand.hbm [shape: bf16[2,2,8,16], index: 2, kind: input, shape index: {}]
  %s3 = inlined_call_operand.hbm [shape: bf16[2,2,8,16], index: 3, kind: input, shape index: {}]
  %s4 = inlined_call_operand.hbm [shape: f32[2,8,32], index: 4, kind: output, shape index: {}]
  %s5 = sld [smem:[#allocation0]]
  $region77: #{tpu_custom_call.1} parent=0
    _
  %s7 = ssub.s32 1, %s5
  %s8 = scalar_select 0, %s7, %s5
  $region1: #{tpu_custom_call.1} parent=0
    #allocation5 [shape = 'u8[512]{0}', space=smem, size = 0x200, scoped, tag = 'input window, operand 0, single buffered']
    #allocation6 [shape = 's32[2]{0}', space=sflag, size = 0x8, scoped, tag = 'scoped memory for tpu_custom_call.1']
    #allocation7 [shape = 's32[2]{0}', space=sflag, size = 0x8, scoped, tag = 'scoped memory for tpu_custom_call.1']
    #allocation8 [shape = 's32[2]{0}', space=sflag, size = 0x8, scoped, tag = 'scoped memory for tpu_custom_call.1']
    #allocation9 [shape = 'u8[8192]{0}', space=vmem, size = 0x2000, scoped, tag = 'input window, operand 1']
    #allocation10 [shape = 'u8[8192]{0}', space=vmem, size = 0x2000, scoped, tag = 'input window, operand 2']
    #allocation11 [shape = 's32[2]{0}', space=sflag, size = 0x8, scoped, tag = 'scoped memory for tpu_custom_call.1']
    #allocation12 [shape = 'u8[8192]{0}', space=vmem, size = 0x2000, scoped, tag = 'input window, operand 3']
    #allocation13 [shape = 'u8[8192]{0}', space=vmem, size = 0x2000, scoped, tag = 'output window, operand 0']
    %9 = vsyncpa [#allocation8], 0
    %10 = vsyncpa [#allocation6], 0
    %s11 = scalar_lea.sflag [#allocation6], 1
    %12 = vsyncpa %s11, 0
    %13 = vsyncpa [#allocation11], 0
    %s14 = scalar_lea.sflag [#allocation11], 1
    %15 = vsyncpa %s14, 0
    %16 = vsyncpa [#allocation7], 0
    %s17 = scalar_lea.sflag [#allocation7], 1
    %18 = vsyncpa %s17, 0
    loop: start=0, step=1, limit=4
    $region2: #{tpu_custom_call.1} parent=1 // loop_pre_header
      _
    $region3: #{tpu_custom_call.1} parent=1 // loop_header
      %s20 = sphi 0, %s24
      %p21 = scmp.ge.s32.totalorder %s20, 4
      %s27 = sphi 0, %s46
      %s28 = sphi 0, %s42
      %s29 = sphi 0, %s38
      %s30 = sphi 0, %s27
      %s31 = sphi 0, %s28
      %s32 = sphi 0, %s29
      %s33 = sphi 0, %s30
      %s34 = sphi 0, %s31
      %s35 = sphi 0, %s32
      %s47 = sphi 0, %s47
      %s49 = sphi 0, %s47
      %s50 = sphi 0, %s49
      %s64 = sphi 0, %s50
      %s72 = sphi 0, %s74
      %s75 = sphi 0, %s72
      %s76 = sphi 0, %s75
      %s92 = sphi 0, %s76
      %s100 = sphi 0, %s102
      %s103 = sphi 0, %s100
      %s104 = sphi 0, %s103
      %s120 = sphi 0, %s104
      %s128 = sphi 0, %s130
      %s131 = sphi 0, %s128
      %s132 = sphi 0, %s131
      %s148 = sphi 0, %s132
      %s156 = sphi 0, %s158
      %s159 = sphi 0, %s156
      %s160 = sphi 0, %s159
      %s176 = sphi 0, %s160
    $region4: #{tpu_custom_call.1} parent=1 // loop_header_branch
      %23 = sbr.rel (%p21) target = $region8
    $region5: #{tpu_custom_call.1} parent=1 // loop_body
      %s25 = ssub.s32 %s20, 1
      %s26 = ssub.s32 %s20, 2
      %s36 = sadd.s32 1, %s29
      %p37 = scmp.ge.s32.totalorder %s36, 1
      %s38 = scalar_select %p37, 0, %s36
      %s39 = sadd.s32 1, %s28
      %s40 = scalar_select %p37, %s39, %s28
      %p41 = scmp.ge.s32.totalorder %s40, 1
      %s42 = scalar_select %p41, 0, %s40
      %s43 = sadd.s32 1, %s27
      %s44 = scalar_select %p41, %s43, %s27
      %p45 = scmp.ge.s32.totalorder %s44, 2
      %s46 = scalar_select %p45, 0, %s44
      %s48 = sadd.s32 %s47, 1
      %p51 = scmp.eq.s32.totalorder %s20, 1
      %p52 = scmp.ne.s32.totalorder %s47, %s49
      %p53 = scmp.eq.s32.totalorder %s20, 0
      %p54 = por %p52, %p53
      %p55 = scmp.ne.s32.totalorder %s47, %s49
      %p56 = scmp.eq.s32.totalorder %s25, 1
      %p57 = por %p55, %p56
      %p58 = scmp.ne.s32.totalorder %s49, %s50
      %p59 = scmp.eq.s32.totalorder %s25, 0
      %p60 = por %p58, %p59
      %p61 = scmp.ne.s32.totalorder %s49, %s50
      %p62 = scmp.eq.s32.totalorder %s26, 1
      %p63 = por %p61, %p62
      %p65 = scmp.ne.s32.totalorder %s50, %s64
      %p66 = scmp.eq.s32.totalorder %s26, 0
      %p67 = por %p65, %p66
      %s68 = ssub.s32 %s27, %s46
      %s69 = ssub.s32 %s28, %s42
      %s70 = sor.u32 %s68, %s69
      %p71 = scmp.eq.s32.totalorder %s70, 0
      %s73 = sadd.s32 %s72, 1
      %s74 = scalar_select %p71, %s72, %s73
      %p77 = pneg %p71
      %p78 = scmp.eq.s32.totalorder %s20, 1
      %p79 = por %p77, %p78
      %p80 = scmp.ne.s32.totalorder %s72, %s75
      %p81 = scmp.eq.s32.totalorder %s20, 0
      %p82 = por %p80, %p81
      %p83 = scmp.ne.s32.totalorder %s72, %s75
      %p84 = scmp.eq.s32.totalorder %s25, 1
      %p85 = por %p83, %p84
      %p86 = scmp.ne.s32.totalorder %s75, %s76
      %p87 = scmp.eq.s32.totalorder %s25, 0
      %p88 = por %p86, %p87
      %p89 = scmp.ne.s32.totalorder %s75, %s76
      %p90 = scmp.eq.s32.totalorder %s26, 1
      %p91 = por %p89, %p90
      %p93 = scmp.ne.s32.totalorder %s76, %s92
      %p94 = scmp.eq.s32.totalorder %s26, 0
      %p95 = por %p93, %p94
      %s96 = ssub.s32 %s27, %s46
      %s97 = ssub.s32 %s29, %s38
      %s98 = sor.u32 %s96, %s97
      %p99 = scmp.eq.s32.totalorder %s98, 0
      %s101 = sadd.s32 %s100, 1
      %s102 = scalar_select %p99, %s100, %s101
      %p105 = pneg %p99
      %p106 = scmp.eq.s32.totalorder %s20, 1
      %p107 = por %p105, %p106
      %p108 = scmp.ne.s32.totalorder %s100, %s103
      %p109 = scmp.eq.s32.totalorder %s20, 0
      %p110 = por %p108, %p109
      %p111 = scmp.ne.s32.totalorder %s100, %s103
      %p112 = scmp.eq.s32.totalorder %s25, 1
      %p113 = por %p111, %p112
      %p114 = scmp.ne.s32.totalorder %s103, %s104
      %p115 = scmp.eq.s32.totalorder %s25, 0
      %p116 = por %p114, %p115
      %p117 = scmp.ne.s32.totalorder %s103, %s104
      %p118 = scmp.eq.s32.totalorder %s26, 1
      %p119 = por %p117, %p118
      %p121 = scmp.ne.s32.totalorder %s104, %s120
      %p122 = scmp.eq.s32.totalorder %s26, 0
      %p123 = por %p121, %p122
      %s124 = ssub.s32 %s27, %s46
      %s125 = ssub.s32 %s29, %s38
      %s126 = sor.u32 %s124, %s125
      %p127 = scmp.eq.s32.totalorder %s126, 0
      %s129 = sadd.s32 %s128, 1
      %s130 = scalar_select %p127, %s128, %s129
      %p133 = pneg %p127
      %p134 = scmp.eq.s32.totalorder %s20, 1
      %p135 = por %p133, %p134
      %p136 = scmp.ne.s32.totalorder %s128, %s131
      %p137 = scmp.eq.s32.totalorder %s20, 0
      %p138 = por %p136, %p137
      %p139 = scmp.ne.s32.totalorder %s128, %s131
      %p140 = scmp.eq.s32.totalorder %s25, 1
      %p141 = por %p139, %p140
      %p142 = scmp.ne.s32.totalorder %s131, %s132
      %p143 = scmp.eq.s32.totalorder %s25, 0
      %p144 = por %p142, %p143
      %p145 = scmp.ne.s32.totalorder %s131, %s132
      %p146 = scmp.eq.s32.totalorder %s26, 1
      %p147 = por %p145, %p146
      %p149 = scmp.ne.s32.totalorder %s132, %s148
      %p150 = scmp.eq.s32.totalorder %s26, 0
      %p151 = por %p149, %p150
      %s152 = ssub.s32 %s27, %s46
      %s153 = ssub.s32 %s28, %s42
      %s154 = sor.u32 %s152, %s153
      %p155 = scmp.eq.s32.totalorder %s154, 0
      %s157 = sadd.s32 %s156, 1
      %s158 = scalar_select %p155, %s156, %s157
      %p161 = pneg %p155
      %p162 = scmp.eq.s32.totalorder %s20, 1
      %p163 = por %p161, %p162
      %p164 = scmp.ne.s32.totalorder %s156, %s159
      %p165 = scmp.eq.s32.totalorder %s20, 0
      %p166 = por %p164, %p165
      %p167 = scmp.ne.s32.totalorder %s156, %s159
      %p168 = scmp.eq.s32.totalorder %s25, 1
      %p169 = por %p167, %p168
      %p170 = scmp.ne.s32.totalorder %s159, %s160
      %p171 = scmp.eq.s32.totalorder %s25, 0
      %p172 = por %p170, %p171
      %p173 = scmp.ne.s32.totalorder %s159, %s160
      %p174 = scmp.eq.s32.totalorder %s26, 1
      %p175 = por %p173, %p174
      %p177 = scmp.ne.s32.totalorder %s160, %s176
      %p178 = scmp.eq.s32.totalorder %s26, 0
      %p179 = por %p177, %p178
      %p180 = scmp.le.s32.totalorder 1, %s20
      %p181 = scmp.lt.s32.totalorder %s20, 3
      %p182 = pnand %p180, %p181
      %p183 = pneg %p182
      // Predicated region
      $region9: #{tpu_custom_call.1} parent=5 // pred_check
        _
      $region10: #{tpu_custom_call.1} parent=5 // pred_check_branch
        %185 = sbr.rel (%p182) target = $region12
      $region11: #{tpu_custom_call.1} parent=5 // pred_region
        %s186 = ssub.s32 %s20, 1
        // Predicated region
        $region13: #{tpu_custom_call.1} parent=11 // pred_check
          %p187 = pneg %p60
        $region14: #{tpu_custom_call.1} parent=11 // pred_check_branch
          %189 = sbr.rel (%p187) target = $region16
        $region15: #{tpu_custom_call.1} parent=11 // pred_region
          %s191 = ssub.s32 16, 16
          %192 = vsyncadd [#allocation8], %s191
          %195 = dma.hbm_to_smem %s0, 16, [#allocation5], [#allocation8]
        $region16: #{tpu_custom_call.1} parent=11 // pred_fallthru
          _
      $region12: #{tpu_custom_call.1} parent=5 // pred_fallthru
        _
      %p196 = scmp.lt.s32.totalorder %s20, 2
      // Predicated region
      $region17: #{tpu_custom_call.1} parent=5 // pred_check
        %p197 = pneg %p196
      $region18: #{tpu_custom_call.1} parent=5 // pred_check_branch
        %199 = sbr.rel (%p197) target = $region20
      $region19: #{tpu_custom_call.1} parent=5 // pred_region
        // Predicated region
        $region21: #{tpu_custom_call.1} parent=19 // pred_check
          %p200 = pneg %p82
        $region22: #{tpu_custom_call.1} parent=19 // pred_check_branch
          %202 = sbr.rel (%p200) target = $region24
        $region23: #{tpu_custom_call.1} parent=19 // pred_region
          %s203 = sand.u32 %s72, 1
          %s204 = scalar_lea.sflag [#allocation6], %s203
          %s205 = sand.u32 %s72, 1
          %s206 = smul.addr %s205, 8
          %s207 = scalar_lea.vmem [#allocation9], %s206
          %s209 = ssub.s32 128, 128
          %210 = vsyncadd %s204, %s209
          %s211 = smul.addr %s27, 2
          %s212 = sadd.s32 %s28, %s211
          %s213 = smul.addr %s212, 64
          %s214 = scalar_lea.hbm %s1, %s213
          %s215 = sshll.u32 %s207, 4
          %s216 = int_to_ptr.vmem [resolvable:$true] %s215
          %221 = dma.hbm_to_vmem [thread:$0]  %s214, 128, %s216, %s204, 64, 64, 4
        $region24: #{tpu_custom_call.1} parent=19 // pred_fallthru
          _
        // Predicated region
        $region25: #{tpu_custom_call.1} parent=19 // pred_check
          %p222 = pneg %p110
        $region26: #{tpu_custom_call.1} parent=19 // pred_check_branch
          %224 = sbr.rel (%p222) target = $region28
        $region27: #{tpu_custom_call.1} parent=19 // pred_region
          %s225 = sand.u32 %s20, 1
          %s226 = scalar_lea.sflag [#allocation11], %s225
          %s227 = sand.u32 %s100, 1
          %s228 = smul.addr %s227, 8
          %s229 = scalar_lea.vmem [#allocation10], %s228
          %s231 = ssub.s32 128, 128
          %232 = vsyncadd %s226, %s231
          %s233 = smul.addr %s27, 2
          %s234 = sadd.s32 %s29, %s233
          %s235 = smul.addr %s234, 64
          %s236 = scalar_lea.hbm %s2, %s235
          %s237 = sshll.u32 %s229, 4
          %s238 = int_to_ptr.vmem [resolvable:$true] %s237
          %243 = dma.hbm_to_vmem [thread:$0]  %s236, 128, %s238, %s226, 64, 64, 4
        $region28: #{tpu_custom_call.1} parent=19 // pred_fallthru
          _
        // Predicated region
        $region29: #{tpu_custom_call.1} parent=19 // pred_check
          %p244 = pneg %p138
        $region30: #{tpu_custom_call.1} parent=19 // pred_check_branch
          %246 = sbr.rel (%p244) target = $region32
        $region31: #{tpu_custom_call.1} parent=19 // pred_region
          %s247 = sand.u32 %s20, 1
          %s248 = scalar_lea.sflag [#allocation11], %s247
          %s249 = sand.u32 %s128, 1
          %s250 = smul.addr %s249, 8
          %s251 = scalar_lea.vmem [#allocation12], %s250
          %s253 = ssub.s32 128, 128
          %254 = vsyncadd %s248, %s253
          %s255 = smul.addr %s27, 2
          %s256 = sadd.s32 %s29, %s255
          %s257 = smul.addr %s256, 64
          %s258 = scalar_lea.hbm %s3, %s257
          %s259 = sshll.u32 %s251, 4
          %s260 = int_to_ptr.vmem [resolvable:$true] %s259
          %265 = dma.hbm_to_vmem [thread:$0]  %s258, 128, %s260, %s248, 64, 64, 4
        $region32: #{tpu_custom_call.1} parent=19 // pred_fallthru
          _
      $region20: #{tpu_custom_call.1} parent=5 // pred_fallthru
        _
      %p266 = scmp.le.s32.totalorder 1, %s20
      %p267 = scmp.lt.s32.totalorder %s20, 3
      %p268 = pnand %p266, %p267
      %p269 = pneg %p268
      // Predicated region
      $region33: #{tpu_custom_call.1} parent=5 // pred_check
        _
      $region34: #{tpu_custom_call.1} parent=5 // pred_check_branch
        %271 = sbr.rel (%p268) target = $region36
      $region35: #{tpu_custom_call.1} parent=5 // pred_region
        %s272 = ssub.s32 %s20, 1
        // Predicated region
        $region37: #{tpu_custom_call.1} parent=35 // pred_check
          %p273 = pneg %p60
        $region38: #{tpu_custom_call.1} parent=35 // pred_check_branch
          %275 = sbr.rel (%p273) target = $region40
        $region39: #{tpu_custom_call.1} parent=35 // pred_region
          %276 = dma.done [#allocation8], 16
        $region40: #{tpu_custom_call.1} parent=35 // pred_fallthru
          _
        %s277 = sand.u32 %s75, 1
        %s278 = scalar_lea.sflag [#allocation6], %s277
        %s279 = sand.u32 %s75, 1
        %s280 = smul.addr %s279, 8
        %s281 = scalar_lea.vmem [#allocation9], %s280
        // Predicated region
        $region41: #{tpu_custom_call.1} parent=35 // pred_check
          %p282 = pneg %p88
        $region42: #{tpu_custom_call.1} parent=35 // pred_check_branch
          %284 = sbr.rel (%p282) target = $region44
        $region43: #{tpu_custom_call.1} parent=35 // pred_region
          %285 = dma.done %s278, 128
        $region44: #{tpu_custom_call.1} parent=35 // pred_fallthru
          _
        %s286 = sand.u32 %s25, 1
        %s287 = scalar_lea.sflag [#allocation11], %s286
        %s288 = sand.u32 %s103, 1
        %s289 = smul.addr %s288, 8
        %s290 = scalar_lea.vmem [#allocation10], %s289
        // Predicated region
        $region45: #{tpu_custom_call.1} parent=35 // pred_check
          %p291 = pneg %p116
        $region46: #{tpu_custom_call.1} parent=35 // pred_check_branch
          %293 = sbr.rel (%p291) target = $region48
        $region47: #{tpu_custom_call.1} parent=35 // pred_region
          %294 = dma.done %s287, 128
        $region48: #{tpu_custom_call.1} parent=35 // pred_fallthru
          _
        %s295 = sand.u32 %s25, 1
        %s296 = scalar_lea.sflag [#allocation11], %s295
        %s297 = sand.u32 %s131, 1
        %s298 = smul.addr %s297, 8
        %s299 = scalar_lea.vmem [#allocation12], %s298
        // Predicated region
        $region49: #{tpu_custom_call.1} parent=35 // pred_check
          %p300 = pneg %p144
        $region50: #{tpu_custom_call.1} parent=35 // pred_check_branch
          %302 = sbr.rel (%p300) target = $region52
        $region51: #{tpu_custom_call.1} parent=35 // pred_region
          %303 = dma.done %s296, 128
        $region52: #{tpu_custom_call.1} parent=35 // pred_fallthru
          _
        %304 = sfence
        %p305 = pneg %p60
        %p306 = pneg %p57
        %s307 = sand.u32 %s75, 1
        %s308 = scalar_lea.sflag [#allocation6], %s307
        %s309 = sand.u32 %s75, 1
        %s310 = smul.addr %s309, 8
        %s311 = scalar_lea.vmem [#allocation9], %s310
        %p312 = pneg %p88
        %p313 = pneg %p85
        %s314 = sand.u32 %s25, 1
        %s315 = scalar_lea.sflag [#allocation11], %s314
        %s316 = sand.u32 %s103, 1
        %s317 = smul.addr %s316, 8
        %s318 = scalar_lea.vmem [#allocation10], %s317
        %p319 = pneg %p116
        %p320 = pneg %p113
        %s321 = sand.u32 %s25, 1
        %s322 = scalar_lea.sflag [#allocation11], %s321
        %s323 = sand.u32 %s131, 1
        %s324 = smul.addr %s323, 8
        %s325 = scalar_lea.vmem [#allocation12], %s324
        %p326 = pneg %p144
        %p327 = pneg %p141
        %p328 = pneg %p172
        %p329 = pneg %p169
        %s330 = sand.u32 %s159, 1
        %s331 = scalar_lea.sflag [#allocation7], %s330
        %s332 = sand.u32 %s159, 1
        %s333 = smul.addr %s332, 8
        %s334 = scalar_lea.vmem [#allocation13], %s333
        %p336 = scmp.eq.s32.totalorder %s32, 0
        // Predicated region
        $region53: #{tpu_custom_call.1} parent=35 // pred_check
          %p337 = pneg %p336
        $region54: #{tpu_custom_call.1} parent=35 // pred_check_branch
          %339 = sbr.rel (%p337) target = $region56
        $region55: #{tpu_custom_call.1} parent=35 // pred_region
          %vm340 = vcmask 7168
          %341 = vst.msk [vmem:[#allocation2] sm:$0xff] %vm340, -inf
          %342 = vst.msk [vmem:[#allocation2 + $0x8] sm:$0xff] %vm340, -inf
          %343 = vst.msk [vmem:[#allocation3] sm:$0xff] %vm340, 0.0
          %344 = vst.msk [vmem:[#allocation3 + $0x8] sm:$0xff] %vm340, 0.0
          %vm345 = vcmask 130048
          %346 = vst.msk [vmem:[#allocation4] sm:$0xff] %vm345, 0.0
          %347 = vst.msk [vmem:[#allocation4 + $0x8] sm:$0xff] %vm345, 0.0
        $region56: #{tpu_custom_call.1} parent=35 // pred_fallthru
          _
        %s348 = smul.u32 %s32, 8
        %s349 = smul.u32 %s31, 8
        %s350 = sadd.s32 %s349, 7
        %p351 = scmp.le.s32.totalorder %s348, %s350
        // Predicated region
        $region57: #{tpu_custom_call.1} parent=35 // pred_check
          %p352 = pneg %p351
        $region58: #{tpu_custom_call.1} parent=35 // pred_check_branch
          %354 = sbr.rel (%p352) target = $region60
        $region59: #{tpu_custom_call.1} parent=35 // pred_region
          %v355 = vld [vmem:[%s281] sm:$0xf]
          %v356 = vld [vmem:[%s281 + $0x4] sm:$0xf]
          %v357 = vld [vmem:[%s290] sm:$0xf]
          %v358 = vld [vmem:[%s290 + $0x4] sm:$0xf]
          %v359 = vlaneseq
          %v360 = vshrl.u32 %v359, 7
          %v361 = vstv %s349
          %v362 = vadd.s32 %v360, %v361
          %v363 = vlaneseq
          %v364 = vand.u32 %v363, 127
          %v365 = vstv %s348
          %v366 = vadd.s32 %v364, %v365
          %v367 = vsub.s32 %v366, %v362
          %vm368 = vcmp.gt.s32.totalorder %v367, 0
          %v369 = vsel %vm368, -2e+09, -1e+09
          %vm370 = vcmp.eq.s32.totalorder %v367, 4294967295
          %s371 = sld [smem:[#allocation5]]
          %v372 = vstv %s371
          %v373 = vsel %vm370, %v372, %v369
          %vm374 = vcmp.eq.s32.totalorder %v367, 4294967294
          %s375 = sld [smem:[#allocation5 + $0x1]]
          %v376 = vstv %s375
          %v377 = vsel %vm374, %v376, %v373
          %vm378 = vcmp.eq.s32.totalorder %v367, 4294967293
          %s379 = sld [smem:[#allocation5 + $0x2]]
          %v380 = vstv %s379
          %v381 = vsel %vm378, %v380, %v377
          %vm382 = vcmask 130048
          %v384 = vsel %vm382, %v355, 0
          %v387 = vsel %vm382, %v357, 0
          %389 = vmatprep.subr.bf16.mxu0 0
          %390 = vmatpush1.bf16.xpose.msra.mxu0 %v387
          %391 = vmatprep.subr.bf16.mxu0 0
          %392 = vmatpush1.bf16.xpose.msra.mxu0 0
          %393 = vmatprep.subr.bf16.mxu0 0
          %394 = vmatpush1.bf16.xpose.msra.mxu0 0
          %395 = vmatprep.subr.bf16.mxu0 0
          %396 = vmatpush1.bf16.xpose.msra.mxu0 0
          %397 = vmatprep.subr.bf16.mxu0 0
          %398 = vmatpush1.bf16.xpose.msra.mxu0 0
          %399 = vmatprep.subr.bf16.mxu0 0
          %400 = vmatpush1.bf16.xpose.msra.mxu0 0
          %401 = vmatprep.subr.bf16.mxu0 0
          %402 = vmatpush1.bf16.xpose.msra.mxu0 0
          %403 = vmatprep.subr.bf16.mxu0 0
          %404 = vmatpush1.bf16.xpose.msra.mxu0 0
          %405 = vmatprep.subr.bf16.mxu0 0
          %406 = vmatpush1.bf16.xpose.msra.mxu0 0
          %407 = vmatprep.subr.bf16.mxu0 0
          %408 = vmatpush1.bf16.xpose.msra.mxu0 0
          %409 = vmatprep.subr.bf16.mxu0 0
          %410 = vmatpush1.bf16.xpose.msra.mxu0 0
          %411 = vmatprep.subr.bf16.mxu0 0
          %412 = vmatpush1.bf16.xpose.msra.mxu0 0
          %413 = vmatprep.subr.bf16.mxu0 0
          %414 = vmatpush1.bf16.xpose.msra.mxu0 0
          %415 = vmatprep.subr.bf16.mxu0 0
          %416 = vmatpush1.bf16.xpose.msra.mxu0 0
          %417 = vmatprep.subr.bf16.mxu0 0
          %418 = vmatpush1.bf16.xpose.msra.mxu0 0
          %419 = vmatprep.subr.bf16.mxu0 0
          %420 = vmatpush1.bf16.xpose.msra.mxu0 0
          %421 = vmatprep.mubr.bf16.mxu0 0
          %422 = vmatmul.mubr.bf16.gmra.mrb[0].mxu0 %v384
          %v423 = vpop.f32.mrb[0].mxu0
          %v424 = vadd.f32 %v381, %v423
          %v425 = vpop.f32.mrb[0].mxu0
          %v426 = vpop.f32.mrb[0].mxu0
          %v427 = vpop.f32.mrb[0].mxu0
          %428 = vdwg.mxu0
          %v430 = vsel %vm382, %v356, 0
          %v433 = vsel %vm382, %v358, 0
          %435 = vmatprep.subr.bf16.mxu0 0
          %436 = vmatpush1.bf16.xpose.msra.mxu0 %v433
          %437 = vmatprep.subr.bf16.mxu0 0
          %438 = vmatpush1.bf16.xpose.msra.mxu0 0
          %439 = vmatprep.subr.bf16.mxu0 0
          %440 = vmatpush1.bf16.xpose.msra.mxu0 0
          %441 = vmatprep.subr.bf16.mxu0 0
          %442 = vmatpush1.bf16.xpose.msra.mxu0 0
          %443 = vmatprep.subr.bf16.mxu0 0
          %444 = vmatpush1.bf16.xpose.msra.mxu0 0
          %445 = vmatprep.subr.bf16.mxu0 0
          %446 = vmatpush1.bf16.xpose.msra.mxu0 0
          %447 = vmatprep.subr.bf16.mxu0 0
          %448 = vmatpush1.bf16.xpose.msra.mxu0 0
          %449 = vmatprep.subr.bf16.mxu0 0
          %450 = vmatpush1.bf16.xpose.msra.mxu0 0
          %451 = vmatprep.subr.bf16.mxu0 0
          %452 = vmatpush1.bf16.xpose.msra.mxu0 0
          %453 = vmatprep.subr.bf16.mxu0 0
          %454 = vmatpush1.bf16.xpose.msra.mxu0 0
          %455 = vmatprep.subr.bf16.mxu0 0
          %456 = vmatpush1.bf16.xpose.msra.mxu0 0
          %457 = vmatprep.subr.bf16.mxu0 0
          %458 = vmatpush1.bf16.xpose.msra.mxu0 0
          %459 = vmatprep.subr.bf16.mxu0 0
          %460 = vmatpush1.bf16.xpose.msra.mxu0 0
          %461 = vmatprep.subr.bf16.mxu0 0
          %462 = vmatpush1.bf16.xpose.msra.mxu0 0
          %463 = vmatprep.subr.bf16.mxu0 0
          %464 = vmatpush1.bf16.xpose.msra.mxu0 0
          %465 = vmatprep.subr.bf16.mxu0 0
          %466 = vmatpush1.bf16.xpose.msra.mxu0 0
          %467 = vmatprep.mubr.bf16.mxu0 0
          %468 = vmatmul.mubr.bf16.gmra.mrb[0].mxu0 %v430
          %v469 = vpop.f32.mrb[0].mxu0
          %v470 = vadd.f32 %v381, %v469
          %v471 = vpop.f32.mrb[0].mxu0
          %v472 = vpop.f32.mrb[0].mxu0
          %v473 = vpop.f32.mrb[0].mxu0
          %474 = vdwg.mxu0
          %v475 = vld [vmem:[#allocation2] sm:$0xff]
          %v476 = vld [vmem:[#allocation2 + $0x8] sm:$0xff]
          %vm477 = vcmask 64512
          %v478 = vsel %vm477, %v424, -inf
          %479 = vmax.xlane.f32.xlu0 %v478
          %v480 = vpop.xlane.xlu0 %479
          %v481 = vsel %vm477, %v470, -inf
          %482 = vmax.xlane.f32.xlu0 %v481
          %v483 = vpop.xlane.xlu0 %482
          %v484 = vmax.f32 %v475, %v480
          %v485 = vmax.f32 %v476, %v483
          %v486 = vsub.f32 %v475, %v484
          %v487 = vsub.f32 %v476, %v485
          %v488 = vmul.f32 %v486, 1.442695
          %v489 = vpow.pop %v488
          %v490 = vmul.f32 %v487, 1.442695
          %v491 = vpow.pop %v490
          %493 = vset.pattern.permute.xlu0 0
          %494 = vperm.xlu0 %493, %v484
          %v495 = vpop.permute.xlu0 %494
          %498 = vset.pattern.permute.xlu0 0
          %499 = vperm.xlu0 %498, %v485
          %v500 = vpop.permute.xlu0 %499
          %v502 = vsub.f32 %v424, %v495
          %v503 = vsub.f32 %v470, %v500
          %v504 = vmul.f32 %v502, 1.442695
          %v505 = vpow.pop %v504
          %v506 = vmul.f32 %v503, 1.442695
          %v507 = vpow.pop %v506
          %v508 = vld [vmem:[#allocation3] sm:$0xff]
          %v509 = vld [vmem:[#allocation3 + $0x8] sm:$0xff]
          %v510 = vmul.f32 %v489, %v508
          %v511 = vmul.f32 %v491, %v509
          %v512 = vsel %vm477, %v505, 0.0
          %513 = vadd.xlane.f32.xlu0 %v512
          %v514 = vpop.xlane.xlu0 %513
          %v515 = vsel %vm477, %v507, 0.0
          %516 = vadd.xlane.f32.xlu0 %v515
          %v517 = vpop.xlane.xlu0 %516
          %v518 = vadd.f32 %v510, %v514
          %v519 = vadd.f32 %v511, %v517
          %vm520 = vcmask 7168
          %521 = vst.msk [vmem:[#allocation3] sm:$0xff] %vm520, %v518
          %522 = vst.msk [vmem:[#allocation3 + $0x8] sm:$0xff] %vm520, %v519
          %v523 = vld [vmem:[#allocation4] sm:$0xff]
          %v524 = vld [vmem:[#allocation4 + $0x8] sm:$0xff]
          %526 = vset.pattern.permute.xlu0 0
          %527 = vperm.xlu0 %526, %v489
          %v528 = vpop.permute.xlu0 %527
          %531 = vset.pattern.permute.xlu0 0
          %532 = vperm.xlu0 %531, %v491
          %v533 = vpop.permute.xlu0 %532
          %v535 = vmul.f32 %v528, %v523
          %v536 = vmul.f32 %v533, %v524
          %v537 = vpack.c.bf16 %v505, %v505
          %v538 = vpack.c.bf16 %v507, %v507
          %v539 = vld [vmem:[%s299] sm:$0xf]
          %v540 = vld [vmem:[%s299 + $0x4] sm:$0xf]
          %v542 = vsel %vm477, %v537, 0
          %vm544 = vcmask 1043456
          %v546 = vsel %vm544, %v539, 0
          %548 = vmatprep.subr.bf16.mxu0 0
          %549 = vmatpush1.bf16.msra.mxu0 %v546
          %550 = vmatprep.subr.bf16.mxu0 0
          %551 = vmatpush1.bf16.msra.mxu0 0
          %552 = vmatprep.subr.bf16.mxu0 0
          %553 = vmatpush1.bf16.msra.mxu0 0
          %554 = vmatprep.subr.bf16.mxu0 0
          %555 = vmatpush1.bf16.msra.mxu0 0
          %556 = vmatprep.subr.bf16.mxu0 0
          %557 = vmatpush1.bf16.msra.mxu0 0
          %558 = vmatprep.subr.bf16.mxu0 0
          %559 = vmatpush1.bf16.msra.mxu0 0
          %560 = vmatprep.subr.bf16.mxu0 0
          %561 = vmatpush1.bf16.msra.mxu0 0
          %562 = vmatprep.subr.bf16.mxu0 0
          %563 = vmatpush1.bf16.msra.mxu0 0
          %564 = vmatprep.subr.bf16.mxu0 0
          %565 = vmatpush1.bf16.msra.mxu0 0
          %566 = vmatprep.subr.bf16.mxu0 0
          %567 = vmatpush1.bf16.msra.mxu0 0
          %568 = vmatprep.subr.bf16.mxu0 0
          %569 = vmatpush1.bf16.msra.mxu0 0
          %570 = vmatprep.subr.bf16.mxu0 0
          %571 = vmatpush1.bf16.msra.mxu0 0
          %572 = vmatprep.subr.bf16.mxu0 0
          %573 = vmatpush1.bf16.msra.mxu0 0
          %574 = vmatprep.subr.bf16.mxu0 0
          %575 = vmatpush1.bf16.msra.mxu0 0
          %576 = vmatprep.subr.bf16.mxu0 0
          %577 = vmatpush1.bf16.msra.mxu0 0
          %578 = vmatprep.subr.bf16.mxu0 0
          %579 = vmatpush1.bf16.msra.mxu0 0
          %580 = vmatprep.mubr.bf16.mxu0 0
          %581 = vmatmul.mubr.bf16.gmra.mrb[0].mxu0 %v542
          %v582 = vpop.f32.mrb[0].mxu0
          %v583 = vadd.f32 0.0, %v582
          %v584 = vpop.f32.mrb[0].mxu0
          %v585 = vpop.f32.mrb[0].mxu0
          %v586 = vpop.f32.mrb[0].mxu0
          %587 = vdwg.mxu0
          %v589 = vsel %vm477, %v538, 0
          %v592 = vsel %vm544, %v540, 0
          %594 = vmatprep.subr.bf16.mxu0 0
          %595 = vmatpush1.bf16.msra.mxu0 %v592
          %596 = vmatprep.subr.bf16.mxu0 0
          %597 = vmatpush1.bf16.msra.mxu0 0
          %598 = vmatprep.subr.bf16.mxu0 0
          %599 = vmatpush1.bf16.msra.mxu0 0
          %600 = vmatprep.subr.bf16.mxu0 0
          %601 = vmatpush1.bf16.msra.mxu0 0
          %602 = vmatprep.subr.bf16.mxu0 0
          %603 = vmatpush1.bf16.msra.mxu0 0
          %604 = vmatprep.subr.bf16.mxu0 0
          %605 = vmatpush1.bf16.msra.mxu0 0
          %606 = vmatprep.subr.bf16.mxu0 0
          %607 = vmatpush1.bf16.msra.mxu0 0
          %608 = vmatprep.subr.bf16.mxu0 0
          %609 = vmatpush1.bf16.msra.mxu0 0
          %610 = vmatprep.subr.bf16.mxu0 0
          %611 = vmatpush1.bf16.msra.mxu0 0
          %612 = vmatprep.subr.bf16.mxu0 0
          %613 = vmatpush1.bf16.msra.mxu0 0
          %614 = vmatprep.subr.bf16.mxu0 0
          %615 = vmatpush1.bf16.msra.mxu0 0
          %616 = vmatprep.subr.bf16.mxu0 0
          %617 = vmatpush1.bf16.msra.mxu0 0
          %618 = vmatprep.subr.bf16.mxu0 0
          %619 = vmatpush1.bf16.msra.mxu0 0
          %620 = vmatprep.subr.bf16.mxu0 0
          %621 = vmatpush1.bf16.msra.mxu0 0
          %622 = vmatprep.subr.bf16.mxu0 0
          %623 = vmatpush1.bf16.msra.mxu0 0
          %624 = vmatprep.subr.bf16.mxu0 0
          %625 = vmatpush1.bf16.msra.mxu0 0
          %626 = vmatprep.mubr.bf16.mxu0 0
          %627 = vmatmul.mubr.bf16.gmra.mrb[0].mxu0 %v589
          %v628 = vpop.f32.mrb[0].mxu0
          %v629 = vadd.f32 0.0, %v628
          %v630 = vpop.f32.mrb[0].mxu0
          %v631 = vpop.f32.mrb[0].mxu0
          %v632 = vpop.f32.mrb[0].mxu0
          %633 = vdwg.mxu0
          %v634 = vadd.f32 %v535, %v583
          %v635 = vadd.f32 %v536, %v629
          %636 = vst.msk [vmem:[#allocation4] sm:$0xff] %vm382, %v634
          %637 = vst.msk [vmem:[#allocation4 + $0x8] sm:$0xff] %vm382, %v635
          %638 = vst.msk [vmem:[#allocation2] sm:$0xff] %vm520, %v484
          %639 = vst.msk [vmem:[#allocation2 + $0x8] sm:$0xff] %vm520, %v485
        $region60: #{tpu_custom_call.1} parent=35 // pred_fallthru
          _
        // Predicated region
        $region61: #{tpu_custom_call.1} parent=35 // pred_check
          %p640 = pneg %p336
        $region62: #{tpu_custom_call.1} parent=35 // pred_check_branch
          %642 = sbr.rel (%p640) target = $region64
        $region63: #{tpu_custom_call.1} parent=35 // pred_region
          %v643 = vld [vmem:[#allocation3] sm:$0xff]
          %v644 = vld [vmem:[#allocation3 + $0x8] sm:$0xff]
          %v645 = vrcp.pop %v643
          %v646 = vrcp.pop %v644
          %v647 = vld [vmem:[#allocation4] sm:$0xff]
          %649 = vset.pattern.permute.xlu0 0
          %650 = vperm.xlu0 %649, %v645
          %v651 = vpop.permute.xlu0 %650
          %v653 = vmul.f32 %v647, %v651
          %vm654 = vcmask 130048
          %655 = vst.msk [vmem:[%s334] sm:$0xff] %vm654, %v653
          %s656 = scalar_lea.vmem [#allocation4], 8
          %v657 = vld [vmem:[%s656] sm:$0xff]
          %659 = vset.pattern.permute.xlu0 0
          %660 = vperm.xlu0 %659, %v646
          %v661 = vpop.permute.xlu0 %660
          %v663 = vmul.f32 %v657, %v661
          %665 = vrot.lane.b32.xlu0 %v663, 16
          %v666 = vpop.permute.xlu0 %665
          %vm668 = vcmask 261248
          %669 = vst.msk [vmem:[%s334] sm:$0xff] %vm668, %v666
        $region64: #{tpu_custom_call.1} parent=35 // pred_fallthru
          _
        %s670 = sand.u32 %s159, 1
        %s671 = scalar_lea.sflag [#allocation7], %s670
        %s672 = sand.u32 %s159, 1
        %s673 = smul.addr %s672, 8
        %s674 = scalar_lea.vmem [#allocation13], %s673
        // Predicated region
        $region65: #{tpu_custom_call.1} parent=35 // pred_check
          %p675 = pneg %p169
        $region66: #{tpu_custom_call.1} parent=35 // pred_check_branch
          %677 = sbr.rel (%p675) target = $region68
        $region67: #{tpu_custom_call.1} parent=35 // pred_region
          %s679 = ssub.s32 128, 128
          %680 = vsyncadd %s671, %s679
          %s681 = sadd.s32 %s31, %s30
          %s682 = smul.addr %s681, 128
          %s683 = scalar_lea.hbm %s4, %s682
          %s685 = sshll.u32 %s674, 4
          %s686 = int_to_ptr.vmem [resolvable:$true] %s685
          %688 = dma.vmem_to_hbm [thread:$0]  %s686, 128, %s683, %s671
        $region68: #{tpu_custom_call.1} parent=35 // pred_fallthru
          _
      $region36: #{tpu_custom_call.1} parent=5 // pred_fallthru
        _
      %p689 = scmp.le.s32.totalorder 2, %s20
      // Predicated region
      $region69: #{tpu_custom_call.1} parent=5 // pred_check
        %p690 = pneg %p689
      $region70: #{tpu_custom_call.1} parent=5 // pred_check_branch
        %692 = sbr.rel (%p690) target = $region72
      $region71: #{tpu_custom_call.1} parent=5 // pred_region
        %s693 = ssub.s32 %s20, 2
        // Predicated region
        $region73: #{tpu_custom_call.1} parent=71 // pred_check
          %p694 = pneg %p175
        $region74: #{tpu_custom_call.1} parent=71 // pred_check_branch
          %696 = sbr.rel (%p694) target = $region76
        $region75: #{tpu_custom_call.1} parent=71 // pred_region
          %s697 = sand.u32 %s160, 1
          %s698 = scalar_lea.sflag [#allocation7], %s697
          %s699 = sand.u32 %s160, 1
          %s700 = smul.addr %s699, 8
          %s701 = scalar_lea.vmem [#allocation13], %s700
          %702 = dma.done %s698, 128
        $region76: #{tpu_custom_call.1} parent=71 // pred_fallthru
          _
      $region72: #{tpu_custom_call.1} parent=5 // pred_fallthru
        _
    $region6: #{tpu_custom_call.1} parent=1 // loop_footer
      %s24 = sadd.s32 1, %s20
    $region7: #{tpu_custom_call.1} parent=1 // loop_footer_branch
      %19 = sbr.rel target = $region3
    $region8: #{tpu_custom_call.1} parent=1 // loop_exit
      _
    %703 = vsyncpa [#allocation6], 1
    %s704 = scalar_lea.sflag [#allocation6], 1
    %705 = vsyncpa %s704, 1
    %706 = vsyncpa [#allocation11], 1
    %s707 = scalar_lea.sflag [#allocation11], 1
    %708 = vsyncpa %s707, 1
    %709 = vsyncpa [#allocation7], 1
    %s710 = scalar_lea.sflag [#allocation7], 1
    %711 = vsyncpa %s710, 1
    %712 = vsyncpa [#allocation8], 1
    %s713 = scalar_lea.sflag [#allocation8], 1
    %714 = vsyncpa %s713, 1

</llo_original>
